<compile_context>
chip_gen: v7x
topology: tpu7x:2x2x1
jax: 0.10.0
libtpu: 0.0.40
codegen_flags: <defaults>
</compile_context>

<pallas_src>
import functools

import jax
import jax.numpy as jnp
from jax.experimental import pallas as pl
from jax.experimental.pallas import tpu as pltpu


# --------------------------------------------------------------------------- #
# Kernel
# --------------------------------------------------------------------------- #
def _ffn_kernel(*refs, negative_slope, has_mask, inv_keep):
    """Grid = (row_tile i, hidden_chunk k).

    h_k   = leaky_relu(x @ W1[:, k] + b1[k]) * dropout_k
    acc  += h_k @ W2[k, :]
    out   = acc + b2         (written on the last hidden chunk)
    """
    if has_mask:
        x_ref, mask_ref, w1_ref, b1_ref, w2_ref, b2_ref, o_ref, acc_ref = refs
    else:
        x_ref, w1_ref, b1_ref, w2_ref, b2_ref, o_ref, acc_ref = refs
        mask_ref = None

    k = pl.program_id(1)

    @pl.when(k == 0)
    def _init():
        acc_ref[...] = jnp.zeros_like(acc_ref)

    x = x_ref[...]                                          # native dtype (bf16/f32)
    # First GEMM on the MXU in the native input dtype, f32 accumulation.
    h = jnp.dot(x, w1_ref[...], preferred_element_type=jnp.float32)
    h = h + b1_ref[...].astype(jnp.float32)
    h = jnp.where(h > 0, h, negative_slope * h)             # LeakyReLU (slope=0.01)
    if mask_ref is not None:
        # bf16 0/1 keep-mask; pre-scaled multiply done in f32 on the VPU.
        h = h * (mask_ref[...].astype(jnp.float32) * inv_keep)

    # Cast back to compute dtype so the second GEMM also takes the fast MXU path.
    acc_ref[...] += jnp.dot(h.astype(x.dtype), w2_ref[...],
                            preferred_element_type=jnp.float32)

    @pl.when(k == pl.num_programs(1) - 1)
    def _finalize():
        o_ref[...] = (acc_ref[...] + b2_ref[...].astype(jnp.float32)).astype(o_ref.dtype)


# --------------------------------------------------------------------------- #
# Tiling / VMEM planning
# --------------------------------------------------------------------------- #
def _vmem_limit_bytes():
    """Per-generation scoped-VMEM limit (~75% of physical, capped)."""
    cap = 64 * 1024 * 1024  # conservative default (v7x per-TensorCore VMEM)
    try:
        info = pltpu.get_tpu_info()
        cap = int(getattr(info, "vmem_capacity_bytes", cap)) or cap
    except Exception:
        pass
    return min(int(cap * 0.75), 96 * 1024 * 1024)


def _plan_tiles(rows, model_dim, hidden_dim, x_itemsize, mask_itemsize, has_mask,
                vmem_limit):
    """Pick (tile_rows, tile_hidden) so everything fits the scoped VMEM budget."""
    D, H = model_dim, hidden_dim
    budget = int(vmem_limit * 0.9)           # headroom for compiler-internal scratch
    w_item = x_itemsize                       # weights share the activation dtype

    # ---- hidden chunk: weight blocks are double-buffered by Pallas ---------
    def weight_bytes(th):
        return 2 * (D * th + th * D) * w_item + 2 * (th + D) * w_item

    weight_budget = int(budget * 0.45)
    if H <= 256 or weight_bytes(H) <= weight_budget:
        th = H                                # fully resident weights, 1 H block
    else:
        th = (weight_budget // (4 * D * w_item)) // 128 * 128
        th = max(128, min(th, H))
        # th must divide H evenly (padded K chunks would feed garbage to the MXU)
        while th > 128 and H % th != 0:
            th -= 128
        if H % th != 0:
            th = H                            # fall back to fully resident
    n_h = H // th

    # ---- row tile ----------------------------------------------------------
    stream_budget = max(budget - weight_bytes(th), 2 * 1024 * 1024)
    per_row = (2 * D * x_itemsize             # x  (double-buffered)
               + 2 * D * x_itemsize           # out (double-buffered)
               + D * 4                        # f32 accumulator scratch
               + th * 4)                      # live f32 hidden intermediate
    if has_mask:
        per_row += 2 * th * mask_itemsize     # bf16 keep-mask (double-buffered)

    tm = max(8, stream_budget // per_row)
    tm = min(tm, 1024, rows)
    for align in (256, 128, 8):               # 256-wide MXU; 128 on v5e; 8 floor
        if tm >= align:
            tm = (tm // align) * align
            break
    if rows <= tm:
        tm = rows                             # single exact block
    elif rows > 512 and pl.cdiv(rows, tm) < 2:
        # v7x megacore: keep >=2 row blocks so the parallel axis can be sharded.
        tm = max(256, ((rows // 2) // 256) * 256)
    return tm, th, n_h


# --------------------------------------------------------------------------- #
# Host-side dropout mask (bf16 keep-mask, scaled in-kernel)
# --------------------------------------------------------------------------- #
def make_dropout_mask(key, dropout_rate, shape):
    """0/1 keep-mask in bf16 (half the stream bytes of an f32 multiplier)."""
    keep = jax.random.bernoulli(key, 1.0 - float(dropout_rate), shape)
    return keep.astype(jnp.bfloat16)


# --------------------------------------------------------------------------- #
# Wrapper
# --------------------------------------------------------------------------- #
def feedforward(x, w1, b1, w2, b2, *, dropout_mask=None, dropout_rate=0.0,
                negative_slope=0.01):
    """x: (B, S, D); w1: (D, H); b1: (H,); w2: (H, D); b2: (D,).
    dropout_mask: optional (B, S, H) bf16 0/1 keep-mask (None = eval mode).
    For real workloads D and H should be multiples of 128 (lane-dense tiles)."""
    B, S, D = x.shape
    H = w1.shape[1]
    rows = B * S

    x2 = x.reshape(rows, D)
    b1_2 = b1.reshape(1, H)
    b2_2 = b2.reshape(1, D)

    has_mask = dropout_mask is not None
    inv_keep = 1.0 / (1.0 - float(dropout_rate)) if has_mask else 1.0

    operands = [x2]
    mask2 = None
    if has_mask:
        mask2 = dropout_mask.reshape(rows, H)
        operands.append(mask2)
    operands += [w1, b1_2, w2, b2_2]

    vmem_limit = _vmem_limit_bytes()
    tm, th, n_h = _plan_tiles(rows, D, H, x.dtype.itemsize,
                              mask2.dtype.itemsize if has_mask else 0,
                              has_mask, vmem_limit)
    grid = (pl.cdiv(rows, tm), n_h)

    in_specs = [pl.BlockSpec((tm, D), lambda i, k: (i, 0))]           # x rows
    if has_mask:
        in_specs.append(pl.BlockSpec((tm, th), lambda i, k: (i, k)))  # keep-mask
    in_specs += [
        pl.BlockSpec((D, th), lambda i, k: (0, k)),                   # W1 chunk
        pl.BlockSpec((1, th), lambda i, k: (0, k)),                   # b1 chunk
        pl.BlockSpec((th, D), lambda i, k: (k, 0)),                   # W2 chunk
        pl.BlockSpec((1, D), lambda i, k: (0, 0)),                    # b2
    ]

    kernel = functools.partial(_ffn_kernel,
                               negative_slope=float(negative_slope),
                               has_mask=has_mask,
                               inv_keep=float(inv_keep))

    flops = 4 * rows * D * H                              # two GEMMs: 2*M*K*N each
    bytes_accessed = (x2.nbytes + w1.nbytes + b1.nbytes + w2.nbytes + b2.nbytes
                      + rows * D * x.dtype.itemsize)
    if has_mask:
        bytes_accessed += mask2.nbytes

    out = pl.pallas_call(
        kernel,
        out_shape=jax.ShapeDtypeStruct((rows, D), x.dtype),
        grid_spec=pltpu.PrefetchScalarGridSpec(
            num_scalar_prefetch=0,
            grid=grid,
            in_specs=in_specs,
            out_specs=pl.BlockSpec((tm, D), lambda i, k: (i, 0)),
            scratch_shapes=[pltpu.VMEM((tm, D), jnp.float32)],        # f32 accumulator
        ),
        compiler_params=pltpu.CompilerParams(
            dimension_semantics=("parallel", "arbitrary"),
            vmem_limit_bytes=vmem_limit,
        ),
        cost_estimate=pl.CostEstimate(flops=int(flops),
                                      transcendentals=0,
                                      bytes_accessed=int(bytes_accessed)),
    )(*operands)

    return out.reshape(B, S, D)


# --------------------------------------------------------------------------- #
# Pure-JAX reference
# --------------------------------------------------------------------------- #
def feedforward_ref(x, w1, b1, w2, b2, dropout_mask=None, dropout_rate=0.0,
                    negative_slope=0.01):
    hp = jax.lax.Precision.HIGHEST
    h = jnp.einsum("bsd,dh->bsh", x, w1, precision=hp) + b1
    h = jnp.where(h > 0, h, negative_slope * h)
    if dropout_mask is not None:
        h = h * (dropout_mask.astype(h.dtype) * (1.0 / (1.0 - float(dropout_rate))))
    return jnp.einsum("bsh,hd->bsd", h, w2, precision=hp) + b2


# --------------------------------------------------------------------------- #
if __name__ == "__main__":
    key = jax.random.PRNGKey(0)
    B, S = 2, 8
    model_dim, hidden_dim = 32, 64
    dropout_rate = 0.1

    kx, kw1, kb1, kw2, kb2, kdrop = jax.random.split(key, 6)
    x = jax.random.normal(kx, (B, S, model_dim), dtype=jnp.float32)
    w1 = jax.random.normal(kw1, (model_dim, hidden_dim), jnp.float32) / jnp.sqrt(model_dim)
    b1 = jax.random.normal(kb1, (hidden_dim,), jnp.float32) * 0.1
    w2 = jax.random.normal(kw2, (hidden_dim, model_dim), jnp.float32) / jnp.sqrt(hidden_dim)
    b2 = jax.random.normal(kb2, (model_dim,), jnp.float32) * 0.1

    # Eval mode (Dropout is identity).
    out_eval = feedforward(x, w1, b1, w2, b2)
    ref_eval = feedforward_ref(x, w1, b1, w2, b2)
    assert jnp.allclose(out_eval, ref_eval, atol=1e-2, rtol=1e-2), "eval-mode mismatch"

    # Training mode with an explicit keep-mask, so the reference reproduces it.
    mask = make_dropout_mask(kdrop, dropout_rate, (B, S, hidden_dim))
    out_train = feedforward(x, w1, b1, w2, b2,
                            dropout_mask=mask, dropout_rate=dropout_rate)
    ref_train = feedforward_ref(x, w1, b1, w2, b2,
                                dropout_mask=mask, dropout_rate=dropout_rate)
    assert jnp.allclose(out_train, ref_train, atol=1e-2, rtol=1e-2), "train-mode mismatch"

    jax.block_until_ready(out_train)
    print("KERNEL_OK")
</pallas_src>

<mosaic_0001>
module attributes {stable_mosaic.version = 11 : i64} {
  func.func @_ffn_kernel(%arg0: i32, %arg1: i32, %arg2: memref<16x32xf32, #tpu.memory_space<vmem>>, %arg3: memref<32x64xf32, #tpu.memory_space<vmem>>, %arg4: memref<1x64xf32, #tpu.memory_space<vmem>>, %arg5: memref<64x32xf32, #tpu.memory_space<vmem>>, %arg6: memref<1x32xf32, #tpu.memory_space<vmem>>, %arg7: memref<16x32xf32, #tpu.memory_space<vmem>>, %arg8: memref<16x32xf32, #tpu.memory_space<vmem>>) attributes {dimension_semantics = [#tpu.dimension_semantics<parallel>, #tpu.dimension_semantics<arbitrary>], iteration_bounds = array<i64: 1, 1>, scalar_prefetch = 0 : i64, scratch_operands = 1 : i64, tpu.core_type = #tpu.core_type<tc>, window_params = [{transform_indices = @transform_0, window_bounds = array<i64: 16, 32>}, {transform_indices = @transform_1, window_bounds = array<i64: 32, 64>}, {transform_indices = @transform_2, window_bounds = array<i64: 1, 64>}, {transform_indices = @transform_3, window_bounds = array<i64: 64, 32>}, {pipeline_mode = #tpu.pipeline_mode<synchronous>, transform_indices = @transform_4, window_bounds = array<i64: 1, 32>}, {transform_indices = @transform_5, window_bounds = array<i64: 16, 32>}]} {
    %c0_i32 = arith.constant 0 : i32
    %0 = arith.cmpi eq, %arg1, %c0_i32 : i32
    %1 = arith.extui %0 : i1 to i32
    %c0_i32_0 = arith.constant 0 : i32
    %2 = arith.cmpi ne, %1, %c0_i32_0 : i32
    scf.if %2 {
      %cst_17 = arith.constant 0.000000e+00 : f32
      %22 = vector.broadcast %cst_17 : f32 to vector<16x32xf32>
      %c0_18 = arith.constant 0 : index
      %c0_19 = arith.constant 0 : index
      %23 = vector.load %arg8[%c0_18, %c0_19] : memref<16x32xf32, #tpu.memory_space<vmem>>, vector<16x32xf32>
      tpu.vector_store %arg8[%c0_18, %c0_19], %22 {strides = array<i32>} : memref<16x32xf32, #tpu.memory_space<vmem>>, vector<16x32xf32>,
    } else {
    }
    %c0 = arith.constant 0 : index
    %c0_1 = arith.constant 0 : index
    %3 = vector.load %arg2[%c0, %c0_1] : memref<16x32xf32, #tpu.memory_space<vmem>>, vector<16x32xf32>
    %c0_2 = arith.constant 0 : index
    %c0_3 = arith.constant 0 : index
    %4 = vector.load %arg3[%c0_2, %c0_3] : memref<32x64xf32, #tpu.memory_space<vmem>>, vector<32x64xf32>
    %cst = arith.constant dense<0.000000e+00> : vector<16x64xf32>
    %5 = tpu.matmul %3, %4, %cst {dimension_numbers = #tpu.dot_dimension_numbers<[1], [0], [0], [1], [0, 0, 1, 1], [], []>} : vector<16x32xf32>, vector<32x64xf32>, vector<16x64xf32> -> vector<16x64xf32>
    %c0_4 = arith.constant 0 : index
    %c0_5 = arith.constant 0 : index
    %6 = vector.load %arg4[%c0_4, %c0_5] : memref<1x64xf32, #tpu.memory_space<vmem>>, vector<1x64xf32>
    %7 = vector.broadcast %6 : vector<1x64xf32> to vector<16x64xf32>
    %8 = arith.addf %5, %7 : vector<16x64xf32>
    %cst_6 = arith.constant 0.000000e+00 : f32
    %9 = vector.broadcast %cst_6 : f32 to vector<16x64xf32>
    %10 = arith.cmpf ogt, %8, %9 : vector<16x64xf32>
    %cst_7 = arith.constant 0.00999999977 : f32
    %11 = vector.broadcast %cst_7 : f32 to vector<16x64xf32>
    %12 = arith.mulf %11, %8 : vector<16x64xf32>
    %13 = arith.select %10, %8, %12 : vector<16x64xi1>, vector<16x64xf32>
    %c0_8 = arith.constant 0 : index
    %c0_9 = arith.constant 0 : index
    %14 = vector.load %arg8[%c0_8, %c0_9] : memref<16x32xf32, #tpu.memory_space<vmem>>, vector<16x32xf32>
    %c0_10 = arith.constant 0 : index
    %c0_11 = arith.constant 0 : index
    %15 = vector.load %arg5[%c0_10, %c0_11] : memref<64x32xf32, #tpu.memory_space<vmem>>, vector<64x32xf32>
    %cst_12 = arith.constant dense<0.000000e+00> : vector<16x32xf32>
    %16 = tpu.matmul %13, %15, %cst_12 {dimension_numbers = #tpu.dot_dimension_numbers<[1], [0], [0], [1], [0, 0, 1, 1], [], []>} : vector<16x64xf32>, vector<64x32xf32>, vector<16x32xf32> -> vector<16x32xf32>
    %17 = arith.addf %14, %16 : vector<16x32xf32>
    %c0_13 = arith.constant 0 : index
    %c0_14 = arith.constant 0 : index
    %18 = vector.load %arg8[%c0_13, %c0_14] : memref<16x32xf32, #tpu.memory_space<vmem>>, vector<16x32xf32>
    tpu.vector_store %arg8[%c0_13, %c0_14], %17 {strides = array<i32>} : memref<16x32xf32, #tpu.memory_space<vmem>>, vector<16x32xf32>,
    %c0_i32_15 = arith.constant 0 : i32
    %19 = arith.cmpi eq, %arg1, %c0_i32_15 : i32
    %20 = arith.extui %19 : i1 to i32
    %c0_i32_16 = arith.constant 0 : i32
    %21 = arith.cmpi ne, %20, %c0_i32_16 : i32
    scf.if %21 {
      %c0_17 = arith.constant 0 : index
      %c0_18 = arith.constant 0 : index
      %22 = vector.load %arg8[%c0_17, %c0_18] : memref<16x32xf32, #tpu.memory_space<vmem>>, vector<16x32xf32>
      %c0_19 = arith.constant 0 : index
      %c0_20 = arith.constant 0 : index
      %23 = vector.load %arg6[%c0_19, %c0_20] : memref<1x32xf32, #tpu.memory_space<vmem>>, vector<1x32xf32>
      %24 = vector.broadcast %23 : vector<1x32xf32> to vector<16x32xf32>
      %25 = arith.addf %22, %24 : vector<16x32xf32>
      %c0_21 = arith.constant 0 : index
      %c0_22 = arith.constant 0 : index
      %26 = vector.load %arg7[%c0_21, %c0_22] : memref<16x32xf32, #tpu.memory_space<vmem>>, vector<16x32xf32>
      tpu.vector_store %arg7[%c0_21, %c0_22], %25 {strides = array<i32>} : memref<16x32xf32, #tpu.memory_space<vmem>>, vector<16x32xf32>,
    } else {
    }
    return
  }
  func.func @transform_0(%arg0: i32, %arg1: i32) -> (i32, i32) {
    %c0_i32 = arith.constant 0 : i32
    %c0_i32_0 = arith.constant 0 : i32
    return %arg0, %c0_i32 : i32, i32
  }
  func.func @transform_1(%arg0: i32, %arg1: i32) -> (i32, i32) {
    %c0_i32 = arith.constant 0 : i32
    %c0_i32_0 = arith.constant 0 : i32
    return %c0_i32, %arg1 : i32, i32
  }
  func.func @transform_2(%arg0: i32, %arg1: i32) -> (i32, i32) {
    %c0_i32 = arith.constant 0 : i32
    %c0_i32_0 = arith.constant 0 : i32
    return %c0_i32, %arg1 : i32, i32
  }
  func.func @transform_3(%arg0: i32, %arg1: i32) -> (i32, i32) {
    %c0_i32 = arith.constant 0 : i32
    %c0_i32_0 = arith.constant 0 : i32
    return %arg1, %c0_i32 : i32, i32
  }
  func.func @transform_4(%arg0: i32, %arg1: i32) -> (i32, i32) {
    %c0_i32 = arith.constant 0 : i32
    %c0_i32_0 = arith.constant 0 : i32
    %c0_i32_1 = arith.constant 0 : i32
    return %c0_i32, %c0_i32_0 : i32, i32
  }
  func.func @transform_5(%arg0: i32, %arg1: i32) -> (i32, i32) {
    %c0_i32 = arith.constant 0 : i32
    %c0_i32_0 = arith.constant 0 : i32
    return %arg0, %c0_i32 : i32, i32
  }
}

</mosaic_0001>

<llo_original>
// kernel: tpu_custom_call.1
$region0: #{tpu_custom_call.1}
  #allocation0 [shape = 'u32[]', space=smem, size = 0x4, offset = 0x4, fixed_abs, tag = 'smem constant byte address 0x4 - core index']
  #allocation1 [shape = 'u32[144,128]{1,0:T(1,128)}', space=vmem, size = 0x12000, scoped, tag = 'internal scratch']
  #allocation2 [shape = 'f32[16,32]{1,0:T(8,128)}', space=vmem, size = 0x2000, scoped, tag = 'scratch operand']
  %s0 = inlined_call_operand.vmem [shape: f32[16,32], index: 0, kind: input, shape index: {}]
  %s1 = inlined_call_operand.vmem [shape: f32[32,64], index: 1, kind: input, shape index: {}]
  %s2 = inlined_call_operand.vmem [shape: f32[1,64], index: 2, kind: input, shape index: {}]
  %s3 = inlined_call_operand.vmem [shape: f32[64,32], index: 3, kind: input, shape index: {}]
  %s4 = inlined_call_operand.vmem [shape: f32[1,32], index: 4, kind: input, shape index: {}]
  %s5 = inlined_call_operand.hbm [shape: f32[16,32], index: 5, kind: output, shape index: {}]
  %s6 = sld [smem:[#allocation0]]
  $region38: #{tpu_custom_call.1} parent=0
    _
  %s8 = ssub.s32 1, %s6
  %s9 = scalar_select 0, %s8, %s6
  $region1: #{tpu_custom_call.1} parent=0
    #allocation3 [shape = 'u8[8192]{0}', space=vmem, size = 0x2000, scoped, tag = 'output window, operand 0, single buffered']
    #allocation4 [shape = 's32[1]{0}', space=sflag, size = 0x4, scoped, tag = 'scoped memory for tpu_custom_call.1']
    %10 = vsyncpa [#allocation4], 0
    // Predicated region
    $region2: #{tpu_custom_call.1} parent=1 // pred_check
      _
    $region3: #{tpu_custom_call.1} parent=1 // pred_check_branch
      %12 = sbr.rel (0) target = $region5
    $region4: #{tpu_custom_call.1} parent=1 // pred_region
      _
    $region5: #{tpu_custom_call.1} parent=1 // pred_fallthru
      _
    // Predicated region
    $region6: #{tpu_custom_call.1} parent=1 // pred_check
      _
    $region7: #{tpu_custom_call.1} parent=1 // pred_check_branch
      %14 = sbr.rel (0) target = $region9
    $region8: #{tpu_custom_call.1} parent=1 // pred_region
      _
    $region9: #{tpu_custom_call.1} parent=1 // pred_fallthru
      _
    // Predicated region
    $region10: #{tpu_custom_call.1} parent=1 // pred_check
      _
    $region11: #{tpu_custom_call.1} parent=1 // pred_check_branch
      %16 = sbr.rel (0) target = $region13
    $region12: #{tpu_custom_call.1} parent=1 // pred_region
      _
    $region13: #{tpu_custom_call.1} parent=1 // pred_fallthru
      _
    // Predicated region
    $region14: #{tpu_custom_call.1} parent=1 // pred_check
      _
    $region15: #{tpu_custom_call.1} parent=1 // pred_check_branch
      %18 = sbr.rel (0) target = $region17
    $region16: #{tpu_custom_call.1} parent=1 // pred_region
      _
    $region17: #{tpu_custom_call.1} parent=1 // pred_fallthru
      _
    // Predicated region
    $region18: #{tpu_custom_call.1} parent=1 // pred_check
      _
    $region19: #{tpu_custom_call.1} parent=1 // pred_check_branch
      %20 = sbr.rel (0) target = $region21
    $region20: #{tpu_custom_call.1} parent=1 // pred_region
      _
    $region21: #{tpu_custom_call.1} parent=1 // pred_fallthru
      _
    %p21 = scmp.eq.s32.totalorder 0, 0
    // Predicated region
    $region22: #{tpu_custom_call.1} parent=1 // pred_check
      %p22 = pneg %p21
    $region23: #{tpu_custom_call.1} parent=1 // pred_check_branch
      %24 = sbr.rel (%p22) target = $region25
    $region24: #{tpu_custom_call.1} parent=1 // pred_region
      %vm25 = vcmask 261120
      %26 = vst.msk [vmem:[#allocation2] sm:$0xff] %vm25, 0.0
      %27 = vst.msk [vmem:[#allocation2 + $0x8] sm:$0xff] %vm25, 0.0
    $region25: #{tpu_custom_call.1} parent=1 // pred_fallthru
      _
    %v28 = vld [vmem:[%s0] sm:$0xff]
    %v29 = vld [vmem:[%s0 + $0x8] sm:$0xff]
    %v30 = vld [vmem:[%s1] sm:$0xff]
    %v31 = vld [vmem:[%s1 + $0x8] sm:$0xff]
    %v32 = vld [vmem:[%s1 + $0x10] sm:$0xff]
    %v33 = vld [vmem:[%s1 + $0x18] sm:$0xff]
    %v34 = vld [vmem:[%s2] sm:$0x1]
    %v36 = vlaneseq
    %v37 = vshrl.u32 %v36, 7
    %v38 = vsub.s32 0, %v37
    %v39 = vrot.slane %v34, %v38
    %vm41 = vcmask 261120
    %v43 = vsel %vm41, %v28, 0
    %v46 = vsel %vm41, %v29, 0
    %48 = vmatprep.subr.mxu0 0.0
    %49 = vmatpush1.msra.mxu0 %v30
    %50 = vmatprep.subr.mxu0 0.0
    %51 = vmatpush1.msra.mxu0 %v31
    %52 = vmatprep.subr.mxu0 0.0
    %53 = vmatpush1.msra.mxu0 %v32
    %54 = vmatprep.subr.mxu0 0.0
    %55 = vmatpush1.msra.mxu0 %v33
    %56 = vmatprep.subr.mxu0 0.0
    %57 = vmatpush1.msra.mxu0 0.0
    %58 = vmatprep.subr.mxu0 0.0
    %59 = vmatpush1.msra.mxu0 0.0
    %60 = vmatprep.subr.mxu0 0.0
    %61 = vmatpush1.msra.mxu0 0.0
    %62 = vmatprep.subr.mxu0 0.0
    %63 = vmatpush1.msra.mxu0 0.0
    %64 = vmatprep.subr.mxu0 0.0
    %65 = vmatpush1.msra.mxu0 0.0
    %66 = vmatprep.subr.mxu0 0.0
    %67 = vmatpush1.msra.mxu0 0.0
    %68 = vmatprep.subr.mxu0 0.0
    %69 = vmatpush1.msra.mxu0 0.0
    %70 = vmatprep.subr.mxu0 0.0
    %71 = vmatpush1.msra.mxu0 0.0
    %72 = vmatprep.subr.mxu0 0.0
    %73 = vmatpush1.msra.mxu0 0.0
    %74 = vmatprep.subr.mxu0 0.0
    %75 = vmatpush1.msra.mxu0 0.0
    %76 = vmatprep.subr.mxu0 0.0
    %77 = vmatpush1.msra.mxu0 0.0
    %78 = vmatprep.subr.mxu0 0.0
    %79 = vmatpush1.msra.mxu0 0.0
    %80 = vmatprep.subr.mxu0 0.0
    %81 = vmatpush1.msra.mxu0 0.0
    %82 = vmatprep.subr.mxu0 0.0
    %83 = vmatpush1.msra.mxu0 0.0
    %84 = vmatprep.subr.mxu0 0.0
    %85 = vmatpush1.msra.mxu0 0.0
    %86 = vmatprep.subr.mxu0 0.0
    %87 = vmatpush1.msra.mxu0 0.0
    %88 = vmatprep.subr.mxu0 0.0
    %89 = vmatpush1.msra.mxu0 0.0
    %90 = vmatprep.subr.mxu0 0.0
    %91 = vmatpush1.msra.mxu0 0.0
    %92 = vmatprep.subr.mxu0 0.0
    %93 = vmatpush1.msra.mxu0 0.0
    %94 = vmatprep.subr.mxu0 0.0
    %95 = vmatpush1.msra.mxu0 0.0
    %96 = vmatprep.subr.mxu0 0.0
    %97 = vmatpush1.msra.mxu0 0.0
    %98 = vmatprep.subr.mxu0 0.0
    %99 = vmatpush1.msra.mxu0 0.0
    %100 = vmatprep.subr.mxu0 0.0
    %101 = vmatpush1.msra.mxu0 0.0
    %102 = vmatprep.subr.mxu0 0.0
    %103 = vmatpush1.msra.mxu0 0.0
    %104 = vmatprep.subr.mxu0 0.0
    %105 = vmatpush1.msra.mxu0 0.0
    %106 = vmatprep.subr.mxu0 0.0
    %107 = vmatpush1.msra.mxu0 0.0
    %108 = vmatprep.subr.mxu0 0.0
    %109 = vmatpush1.msra.mxu0 0.0
    %110 = vmatprep.subr.mxu0 0.0
    %111 = vmatpush1.msra.mxu0 0.0
    %112 = vmatprep.mubr.f32.mxu0 0.0
    %113 = vmatmul.mubr.f32.gmra.mrb[0].mxu0 %v43
    %v114 = vpop.f32.mrb[0].mxu0
    %v115 = vadd.f32 %v39, %v114
    %v116 = vpop.f32.mrb[0].mxu0
    %117 = vmatprep.mubr.f32.mxu0 0.0
    %118 = vmatmul.mubr.f32.gmra.mrb[0].mxu0 %v46
    %v119 = vpop.f32.mrb[0].mxu0
    %v120 = vadd.f32 %v39, %v119
    %v121 = vpop.f32.mrb[0].mxu0
    %122 = vdwg.mxu0
    %vm123 = vcmp.gt.f32.partialorder %v115, 0.0
    %vm124 = vcmp.gt.f32.partialorder %v120, 0.0
    %v125 = vmul.f32 %v115, 0.01
    %v126 = vmul.f32 %v120, 0.01
    %v127 = vsel %vm123, %v115, %v125
    %v128 = vsel %vm124, %v120, %v126
    %v129 = vld [vmem:[#allocation2] sm:$0xff]
    %v130 = vld [vmem:[#allocation2 + $0x8] sm:$0xff]
    %v131 = vld [vmem:[%s3] sm:$0xff]
    %v132 = vld [vmem:[%s3 + $0x8] sm:$0xff]
    %v133 = vld [vmem:[%s3 + $0x10] sm:$0xff]
    %v134 = vld [vmem:[%s3 + $0x18] sm:$0xff]
    %v135 = vld [vmem:[%s3 + $0x20] sm:$0xff]
    %v136 = vld [vmem:[%s3 + $0x28] sm:$0xff]
    %v137 = vld [vmem:[%s3 + $0x30] sm:$0xff]
    %v138 = vld [vmem:[%s3 + $0x38] sm:$0xff]
    %vm139 = vcmask 523264
    %v141 = vsel %vm139, %v127, 0
    %v144 = vsel %vm139, %v128, 0
    %146 = vmatprep.subr.mxu0 0.0
    %147 = vmatpush1.msra.mxu0 %v131
    %148 = vmatprep.subr.mxu0 0.0
    %149 = vmatpush1.msra.mxu0 %v132
    %150 = vmatprep.subr.mxu0 0.0
    %151 = vmatpush1.msra.mxu0 %v133
    %152 = vmatprep.subr.mxu0 0.0
    %153 = vmatpush1.msra.mxu0 %v134
    %154 = vmatprep.subr.mxu0 0.0
    %155 = vmatpush1.msra.mxu0 %v135
    %156 = vmatprep.subr.mxu0 0.0
    %157 = vmatpush1.msra.mxu0 %v136
    %158 = vmatprep.subr.mxu0 0.0
    %159 = vmatpush1.msra.mxu0 %v137
    %160 = vmatprep.subr.mxu0 0.0
    %161 = vmatpush1.msra.mxu0 %v138
    %162 = vmatprep.subr.mxu0 0.0
    %163 = vmatpush1.msra.mxu0 0.0
    %164 = vmatprep.subr.mxu0 0.0
    %165 = vmatpush1.msra.mxu0 0.0
    %166 = vmatprep.subr.mxu0 0.0
    %167 = vmatpush1.msra.mxu0 0.0
    %168 = vmatprep.subr.mxu0 0.0
    %169 = vmatpush1.msra.mxu0 0.0
    %170 = vmatprep.subr.mxu0 0.0
    %171 = vmatpush1.msra.mxu0 0.0
    %172 = vmatprep.subr.mxu0 0.0
    %173 = vmatpush1.msra.mxu0 0.0
    %174 = vmatprep.subr.mxu0 0.0
    %175 = vmatpush1.msra.mxu0 0.0
    %176 = vmatprep.subr.mxu0 0.0
    %177 = vmatpush1.msra.mxu0 0.0
    %178 = vmatprep.subr.mxu0 0.0
    %179 = vmatpush1.msra.mxu0 0.0
    %180 = vmatprep.subr.mxu0 0.0
    %181 = vmatpush1.msra.mxu0 0.0
    %182 = vmatprep.subr.mxu0 0.0
    %183 = vmatpush1.msra.mxu0 0.0
    %184 = vmatprep.subr.mxu0 0.0
    %185 = vmatpush1.msra.mxu0 0.0
    %186 = vmatprep.subr.mxu0 0.0
    %187 = vmatpush1.msra.mxu0 0.0
    %188 = vmatprep.subr.mxu0 0.0
    %189 = vmatpush1.msra.mxu0 0.0
    %190 = vmatprep.subr.mxu0 0.0
    %191 = vmatpush1.msra.mxu0 0.0
    %192 = vmatprep.subr.mxu0 0.0
    %193 = vmatpush1.msra.mxu0 0.0
    %194 = vmatprep.subr.mxu0 0.0
    %195 = vmatpush1.msra.mxu0 0.0
    %196 = vmatprep.subr.mxu0 0.0
    %197 = vmatpush1.msra.mxu0 0.0
    %198 = vmatprep.subr.mxu0 0.0
    %199 = vmatpush1.msra.mxu0 0.0
    %200 = vmatprep.subr.mxu0 0.0
    %201 = vmatpush1.msra.mxu0 0.0
    %202 = vmatprep.subr.mxu0 0.0
    %203 = vmatpush1.msra.mxu0 0.0
    %204 = vmatprep.subr.mxu0 0.0
    %205 = vmatpush1.msra.mxu0 0.0
    %206 = vmatprep.subr.mxu0 0.0
    %207 = vmatpush1.msra.mxu0 0.0
    %208 = vmatprep.subr.mxu0 0.0
    %209 = vmatpush1.msra.mxu0 0.0
    %210 = vmatprep.mubr.f32.mxu0 0.0
    %211 = vmatmul.mubr.f32.gmra.mrb[0].mxu0 %v141
    %v212 = vpop.f32.mrb[0].mxu0
    %v213 = vadd.f32 0.0, %v212
    %v214 = vpop.f32.mrb[0].mxu0
    %215 = vmatprep.mubr.f32.mxu0 0.0
    %216 = vmatmul.mubr.f32.gmra.mrb[0].mxu0 %v144
    %v217 = vpop.f32.mrb[0].mxu0
    %v218 = vadd.f32 0.0, %v217
    %v219 = vpop.f32.mrb[0].mxu0
    %220 = vdwg.mxu0
    %v221 = vadd.f32 %v129, %v213
    %v222 = vadd.f32 %v130, %v218
    %223 = vst.msk [vmem:[#allocation2] sm:$0xff] %vm41, %v221
    %224 = vst.msk [vmem:[#allocation2 + $0x8] sm:$0xff] %vm41, %v222
    // Predicated region
    $region26: #{tpu_custom_call.1} parent=1 // pred_check
      %p225 = pneg %p21
    $region27: #{tpu_custom_call.1} parent=1 // pred_check_branch
      %227 = sbr.rel (%p225) target = $region29
    $region28: #{tpu_custom_call.1} parent=1 // pred_region
      %v228 = vld [vmem:[#allocation2] sm:$0xff]
      %v229 = vld [vmem:[#allocation2 + $0x8] sm:$0xff]
      %v230 = vld [vmem:[%s4] sm:$0x1]
      %v232 = vlaneseq
      %v233 = vshrl.u32 %v232, 7
      %v234 = vsub.s32 0, %v233
      %v235 = vrot.slane %v230, %v234
      %v237 = vadd.f32 %v228, %v235
      %v238 = vadd.f32 %v229, %v235
      %239 = vst.msk [vmem:[#allocation3] sm:$0xff] %vm41, %v237
      %240 = vst.msk [vmem:[#allocation3 + $0x8] sm:$0xff] %vm41, %v238
    $region29: #{tpu_custom_call.1} parent=1 // pred_fallthru
      _
    // Predicated region
    $region30: #{tpu_custom_call.1} parent=1 // pred_check
      _
    $region31: #{tpu_custom_call.1} parent=1 // pred_check_branch
      %242 = sbr.rel (0) target = $region33
    $region32: #{tpu_custom_call.1} parent=1 // pred_region
      %s244 = ssub.s32 256, 256
      %245 = vsyncadd [#allocation4], %s244
      %s246 = sshll.u32 [#allocation3], 4
      %s247 = int_to_ptr.vmem [resolvable:$true] %s246
      %252 = dma.vmem_to_hbm [thread:$0]  %s247, 256, %s5, [#allocation4], 128, 128, 8
    $region33: #{tpu_custom_call.1} parent=1 // pred_fallthru
      _
    // Predicated region
    $region34: #{tpu_custom_call.1} parent=1 // pred_check
      _
    $region35: #{tpu_custom_call.1} parent=1 // pred_check_branch
      %254 = sbr.rel (0) target = $region37
    $region36: #{tpu_custom_call.1} parent=1 // pred_region
      %255 = dma.done [#allocation4], 256
    $region37: #{tpu_custom_call.1} parent=1 // pred_fallthru
      _
    %256 = vsyncpa [#allocation4], 1

</llo_original>
